<compile_context>
chip_gen: v6e
topology: v6e:2x2x1
jax: 0.10.0
libtpu: 0.0.40
codegen_flags: <defaults>
</compile_context>

<pallas_src>
import math

import jax
import jax.numpy as jnp
from jax.experimental import pallas as pl
from jax.experimental.pallas import tpu as pltpu

_SUBLANE = 8  # f32 sublane count


def _round_up(n, m):
    return ((n + m - 1) // m) * m


def _policy_kernel(x_ref, w1_ref, b1_ref, w2_ref, b2_ref, w3_ref, b3_ref, out_ref):
    """tanh(xW1+b1) -> tanh(.W2+b2) -> softmax(.W3+b3); f32 activations/softmax."""
    mdt = w1_ref.dtype  # MXU operand dtype (bf16 fast path or f32)
    h = jnp.tanh(
        jnp.dot(x_ref[...].astype(mdt), w1_ref[...],
                preferred_element_type=jnp.float32)
        + b1_ref[...]
    )
    h = jnp.tanh(
        jnp.dot(h.astype(mdt), w2_ref[...],
                preferred_element_type=jnp.float32)
        + b2_ref[...]
    )
    logits = (
        jnp.dot(h.astype(mdt), w3_ref[...],
                preferred_element_type=jnp.float32)
        + b3_ref[...]
    )
    # numerically stable softmax over the last dim; exact division so every
    # row sums to 1 (required by downstream multinomial sampling / log-prob).
    m = jnp.max(logits, axis=-1, keepdims=True)
    e = jnp.exp(logits - m)
    denom = jnp.sum(e, axis=-1, keepdims=True)
    out_ref[...] = (e / denom).astype(out_ref.dtype)


def discrete_policy_forward(x, params, *, mxu_dtype=jnp.bfloat16, batch_tile=2048):
    """Full MLP policy forward in one Pallas kernel, tiled over batch.

    mxu_dtype=jnp.bfloat16 (default): weights pre-cast once, MXU runs its
    native bf16 path with f32 accumulation (recommended on v6e/v7x, fine on
    v5e). mxu_dtype=jnp.float32 matches the PyTorch module numerics exactly.
    """
    assert batch_tile % _SUBLANE == 0
    w1, b1, w2, b2, w3, b3 = params
    B, S = x.shape
    H1, H2, A = w1.shape[1], w2.shape[1], w3.shape[1]

    x = x.astype(jnp.float32)
    # Weights stay VMEM-resident across the whole grid -> cast once here
    # instead of re-casting on the VPU every grid step. Biases stay f32.
    w1 = w1.astype(mxu_dtype)
    w2 = w2.astype(mxu_dtype)
    w3 = w3.astype(mxu_dtype)
    b1 = b1.reshape(1, H1).astype(jnp.float32)
    b2 = b2.reshape(1, H2).astype(jnp.float32)
    b3 = b3.reshape(1, A).astype(jnp.float32)

    # Large batch tile (per-step overhead dominates; VMEM is a non-issue), but
    # keep >=2 grid steps for moderately large batches so "parallel" can use
    # both v7x TensorCores.
    TB = min(_round_up(B, _SUBLANE), batch_tile)
    if B >= 256 and pl.cdiv(B, TB) < 2:
        TB = _round_up(pl.cdiv(B, 2), _SUBLANE)
    grid = (pl.cdiv(B, TB),)

    def resident(a):
        nd = a.ndim
        return pl.BlockSpec(a.shape, lambda i, _nd=nd: (0,) * _nd)

    wbytes = sum(int(a.size) * a.dtype.itemsize for a in (w1, w2, w3, b1, b2, b3))
    cost = pl.CostEstimate(
        flops=2 * B * (S * H1 + H1 * H2 + H2 * A),
        transcendentals=B * (H1 + H2 + A),  # 2x tanh layers + exp
        bytes_accessed=4 * (B * S + B * A) + wbytes,
    )

    return pl.pallas_call(
        _policy_kernel,
        out_shape=jax.ShapeDtypeStruct((B, A), jnp.float32),
        grid=grid,
        in_specs=[
            # streamed batch tile; S is the full last dim (no 128-lane pad in HBM)
            pl.BlockSpec((TB, S), lambda i: (i, 0)),
            resident(w1), resident(b1),
            resident(w2), resident(b2),
            resident(w3), resident(b3),
        ],
        # narrow (B, A) output written directly -> no post-kernel slice pass
        out_specs=pl.BlockSpec((TB, A), lambda i: (i, 0)),
        compiler_params=pltpu.CompilerParams(
            dimension_semantics=("parallel",),
        ),
        cost_estimate=cost,
    )(x, w1, b1, w2, b2, w3, b3)


def init_discrete_policy_params(key, state_dim, action_num, hidden_size=(100, 100)):
    """Deterministic init mirroring nn.Linear default (uniform +-1/sqrt(fan_in)),
    with action-head weight *= 0.1 and bias zeroed, as in the PyTorch module."""
    dims = [state_dim] + list(hidden_size)
    keys = jax.random.split(key, 2 * (len(hidden_size) + 1))
    params = []
    ki = 0
    for i in range(len(hidden_size)):
        bound = 1.0 / math.sqrt(dims[i])
        w = jax.random.uniform(keys[ki], (dims[i], dims[i + 1]), jnp.float32, -bound, bound)
        b = jax.random.uniform(keys[ki + 1], (1, dims[i + 1]), jnp.float32, -bound, bound)
        ki += 2
        params += [w, b]
    bound = 1.0 / math.sqrt(dims[-1])
    w3 = jax.random.uniform(keys[ki], (dims[-1], action_num), jnp.float32, -bound, bound) * 0.1
    b3 = jnp.zeros((1, action_num), jnp.float32)
    params += [w3, b3]
    return tuple(params)


def _reference_forward(x, params):
    w1, b1, w2, b2, w3, b3 = params
    h = jnp.tanh(x @ w1 + b1)
    h = jnp.tanh(h @ w2 + b2)
    return jax.nn.softmax(h @ w3 + b3, axis=-1)


if __name__ == "__main__":
    # small shapes consistent with the module's forward: x is [batch, state_dim]
    batch = 4
    state_dim = 16
    action_num = 6
    hidden_size = (32, 32)

    key = jax.random.PRNGKey(0)
    k_x, k_p, k_x2 = jax.random.split(key, 3)
    x = jax.random.normal(k_x, (batch, state_dim), jnp.float32)
    params = init_discrete_policy_params(k_p, state_dim, action_num, hidden_size)
    ref = _reference_forward(x, params)

    # f32 MXU path (exact module semantics)
    out_f32 = jax.block_until_ready(
        discrete_policy_forward(x, params, mxu_dtype=jnp.float32))
    assert out_f32.shape == (batch, action_num)
    assert jnp.allclose(out_f32, ref, atol=1e-3, rtol=1e-3)
    assert jnp.allclose(jnp.sum(out_f32, axis=-1), 1.0, atol=1e-4)

    # default bf16 MXU operands (v5e/v6e/v7x fast path), f32 accumulation
    out_bf16 = jax.block_until_ready(discrete_policy_forward(x, params))
    assert out_bf16.shape == (batch, action_num)
    assert jnp.allclose(out_bf16, ref, atol=2e-2)
    assert jnp.allclose(jnp.sum(out_bf16, axis=-1), 1.0, atol=1e-4)

    # exercise multi-step grid + partial last tile (B not a multiple of the tile)
    x2 = jax.random.normal(k_x2, (300, state_dim), jnp.float32)
    out2 = jax.block_until_ready(
        discrete_policy_forward(x2, params, mxu_dtype=jnp.float32, batch_tile=128))
    ref2 = _reference_forward(x2, params)
    assert out2.shape == (300, action_num)
    assert jnp.allclose(out2, ref2, atol=1e-3, rtol=1e-3)

    # TODO(synk): select_action / select_greedy_action / get_log_prob / get_fim
    # (multinomial sampling, argmax, gather, FIM assembly) are host-side
    # utilities on top of forward() and are not implemented as kernels here.

    print("KERNEL_OK")
</pallas_src>

<mosaic_0001>
module attributes {stable_mosaic.version = 11 : i64} {
  func.func @_policy_kernel(%arg0: i32, %arg1: memref<8x16xf32, #tpu.memory_space<vmem>>, %arg2: memref<16x32xf32, #tpu.memory_space<vmem>>, %arg3: memref<1x32xf32, #tpu.memory_space<vmem>>, %arg4: memref<32x32xf32, #tpu.memory_space<vmem>>, %arg5: memref<1x32xf32, #tpu.memory_space<vmem>>, %arg6: memref<32x6xf32, #tpu.memory_space<vmem>>, %arg7: memref<1x6xf32, #tpu.memory_space<vmem>>, %arg8: memref<8x6xf32, #tpu.memory_space<vmem>>) attributes {dimension_semantics = [#tpu.dimension_semantics<parallel>], iteration_bounds = array<i64: 1>, scalar_prefetch = 0 : i64, scratch_operands = 0 : i64, tpu.core_type = #tpu.core_type<tc>, window_params = [{transform_indices = @transform_0, window_bounds = array<i64: 8, 16>}, {pipeline_mode = #tpu.pipeline_mode<synchronous>, transform_indices = @transform_1, window_bounds = array<i64: 16, 32>}, {pipeline_mode = #tpu.pipeline_mode<synchronous>, transform_indices = @transform_2, window_bounds = array<i64: 1, 32>}, {pipeline_mode = #tpu.pipeline_mode<synchronous>, transform_indices = @transform_3, window_bounds = array<i64: 32, 32>}, {pipeline_mode = #tpu.pipeline_mode<synchronous>, transform_indices = @transform_4, window_bounds = array<i64: 1, 32>}, {pipeline_mode = #tpu.pipeline_mode<synchronous>, transform_indices = @transform_5, window_bounds = array<i64: 32, 6>}, {pipeline_mode = #tpu.pipeline_mode<synchronous>, transform_indices = @transform_6, window_bounds = array<i64: 1, 6>}, {transform_indices = @transform_7, window_bounds = array<i64: 8, 6>}]} {
    %c0 = arith.constant 0 : index
    %c0_0 = arith.constant 0 : index
    %0 = vector.load %arg1[%c0, %c0_0] : memref<8x16xf32, #tpu.memory_space<vmem>>, vector<8x16xf32>
    %c0_1 = arith.constant 0 : index
    %c0_2 = arith.constant 0 : index
    %1 = vector.load %arg2[%c0_1, %c0_2] : memref<16x32xf32, #tpu.memory_space<vmem>>, vector<16x32xf32>
    %cst = arith.constant dense<0.000000e+00> : vector<8x32xf32>
    %2 = tpu.matmul %0, %1, %cst {dimension_numbers = #tpu.dot_dimension_numbers<[1], [0], [0], [1], [0, 0, 1, 1], [], []>} : vector<8x16xf32>, vector<16x32xf32>, vector<8x32xf32> -> vector<8x32xf32>
    %c0_3 = arith.constant 0 : index
    %c0_4 = arith.constant 0 : index
    %3 = vector.load %arg3[%c0_3, %c0_4] : memref<1x32xf32, #tpu.memory_space<vmem>>, vector<1x32xf32>
    %4 = vector.broadcast %3 : vector<1x32xf32> to vector<8x32xf32>
    %5 = arith.addf %2, %4 : vector<8x32xf32>
    %6 = math.tanh %5 : vector<8x32xf32>
    %c0_5 = arith.constant 0 : index
    %c0_6 = arith.constant 0 : index
    %7 = vector.load %arg4[%c0_5, %c0_6] : memref<32x32xf32, #tpu.memory_space<vmem>>, vector<32x32xf32>
    %cst_7 = arith.constant dense<0.000000e+00> : vector<8x32xf32>
    %8 = tpu.matmul %6, %7, %cst_7 {dimension_numbers = #tpu.dot_dimension_numbers<[1], [0], [0], [1], [0, 0, 1, 1], [], []>} : vector<8x32xf32>, vector<32x32xf32>, vector<8x32xf32> -> vector<8x32xf32>
    %c0_8 = arith.constant 0 : index
    %c0_9 = arith.constant 0 : index
    %9 = vector.load %arg5[%c0_8, %c0_9] : memref<1x32xf32, #tpu.memory_space<vmem>>, vector<1x32xf32>
    %10 = vector.broadcast %9 : vector<1x32xf32> to vector<8x32xf32>
    %11 = arith.addf %8, %10 : vector<8x32xf32>
    %12 = math.tanh %11 : vector<8x32xf32>
    %c0_10 = arith.constant 0 : index
    %c0_11 = arith.constant 0 : index
    %13 = vector.load %arg6[%c0_10, %c0_11] : memref<32x6xf32, #tpu.memory_space<vmem>>, vector<32x6xf32>
    %cst_12 = arith.constant dense<0.000000e+00> : vector<8x6xf32>
    %14 = tpu.matmul %12, %13, %cst_12 {dimension_numbers = #tpu.dot_dimension_numbers<[1], [0], [0], [1], [0, 0, 1, 1], [], []>} : vector<8x32xf32>, vector<32x6xf32>, vector<8x6xf32> -> vector<8x6xf32>
    %c0_13 = arith.constant 0 : index
    %c0_14 = arith.constant 0 : index
    %15 = vector.load %arg7[%c0_13, %c0_14] : memref<1x6xf32, #tpu.memory_space<vmem>>, vector<1x6xf32>
    %16 = vector.broadcast %15 : vector<1x6xf32> to vector<8x6xf32>
    %17 = arith.addf %14, %16 : vector<8x6xf32>
    %cst_15 = arith.constant dense<0xFF800000> : vector<8xf32>
    %18 = vector.multi_reduction <maximumf>, %17, %cst_15 [1] : vector<8x6xf32> to vector<8xf32>
    %19 = vector.shape_cast %18 : vector<8xf32> to vector<8x1xf32>
    %20 = vector.broadcast %19 : vector<8x1xf32> to vector<8x6xf32>
    %21 = arith.subf %17, %20 : vector<8x6xf32>
    %22 = math.exp %21 : vector<8x6xf32>
    %cst_16 = arith.constant dense<0.000000e+00> : vector<8xf32>
    %23 = vector.multi_reduction <add>, %22, %cst_16 [1] : vector<8x6xf32> to vector<8xf32>
    %24 = vector.shape_cast %23 : vector<8xf32> to vector<8x1xf32>
    %25 = vector.broadcast %24 : vector<8x1xf32> to vector<8x6xf32>
    %26 = arith.divf %22, %25 : vector<8x6xf32>
    %c0_17 = arith.constant 0 : index
    %c0_18 = arith.constant 0 : index
    %27 = vector.load %arg8[%c0_17, %c0_18] : memref<8x6xf32, #tpu.memory_space<vmem>>, vector<8x6xf32>
    tpu.vector_store %arg8[%c0_17, %c0_18], %26 {strides = array<i32>} : memref<8x6xf32, #tpu.memory_space<vmem>>, vector<8x6xf32>,
    return
  }
  func.func @transform_0(%arg0: i32) -> (i32, i32) {
    %c0_i32 = arith.constant 0 : i32
    %c0_i32_0 = arith.constant 0 : i32
    return %arg0, %c0_i32 : i32, i32
  }
  func.func @transform_1(%arg0: i32) -> (i32, i32) {
    %c0_i32 = arith.constant 0 : i32
    %c0_i32_0 = arith.constant 0 : i32
    %c0_i32_1 = arith.constant 0 : i32
    return %c0_i32, %c0_i32_0 : i32, i32
  }
  func.func @transform_2(%arg0: i32) -> (i32, i32) {
    %c0_i32 = arith.constant 0 : i32
    %c0_i32_0 = arith.constant 0 : i32
    %c0_i32_1 = arith.constant 0 : i32
    return %c0_i32, %c0_i32_0 : i32, i32
  }
  func.func @transform_3(%arg0: i32) -> (i32, i32) {
    %c0_i32 = arith.constant 0 : i32
    %c0_i32_0 = arith.constant 0 : i32
    %c0_i32_1 = arith.constant 0 : i32
    return %c0_i32, %c0_i32_0 : i32, i32
  }
  func.func @transform_4(%arg0: i32) -> (i32, i32) {
    %c0_i32 = arith.constant 0 : i32
    %c0_i32_0 = arith.constant 0 : i32
    %c0_i32_1 = arith.constant 0 : i32
    return %c0_i32, %c0_i32_0 : i32, i32
  }
  func.func @transform_5(%arg0: i32) -> (i32, i32) {
    %c0_i32 = arith.constant 0 : i32
    %c0_i32_0 = arith.constant 0 : i32
    %c0_i32_1 = arith.constant 0 : i32
    return %c0_i32, %c0_i32_0 : i32, i32
  }
  func.func @transform_6(%arg0: i32) -> (i32, i32) {
    %c0_i32 = arith.constant 0 : i32
    %c0_i32_0 = arith.constant 0 : i32
    %c0_i32_1 = arith.constant 0 : i32
    return %c0_i32, %c0_i32_0 : i32, i32
  }
  func.func @transform_7(%arg0: i32) -> (i32, i32) {
    %c0_i32 = arith.constant 0 : i32
    %c0_i32_0 = arith.constant 0 : i32
    return %arg0, %c0_i32 : i32, i32
  }
}

</mosaic_0001>

<llo_original>
// kernel: tpu_custom_call.1
$region0: #{tpu_custom_call.1}
  #allocation0 [shape = 'u32[]', space=smem, size = 0x4, offset = 0x4, fixed_abs, tag = 'smem constant byte address 0x4 - core index']
  #allocation1 [shape = 'u32[144,128]{1,0:T(1,128)}', space=vmem, size = 0x12000, scoped, tag = 'internal scratch']
  %s0 = inlined_call_operand.vmem [shape: f32[4,16], index: 0, kind: input, shape index: {}]
  %s1 = inlined_call_operand.hbm [shape: f32[16,32], index: 1, kind: input, shape index: {}]
  %s2 = inlined_call_operand.vmem [shape: f32[1,32], index: 2, kind: input, shape index: {}]
  %s3 = inlined_call_operand.vmem [shape: f32[32,32], index: 3, kind: input, shape index: {}]
  %s4 = inlined_call_operand.vmem [shape: f32[1,32], index: 4, kind: input, shape index: {}]
  %s5 = inlined_call_operand.vmem [shape: f32[32,6], index: 5, kind: input, shape index: {}]
  %s6 = inlined_call_operand.vmem [shape: f32[1,6], index: 6, kind: input, shape index: {}]
  %s7 = inlined_call_operand.hbm [shape: f32[4,6], index: 7, kind: output, shape index: {}]
  %s8 = sld [smem:[#allocation0]]
  $region42: #{tpu_custom_call.1} parent=0
    _
  %s10 = ssub.s32 1, %s8
  %s11 = scalar_select 0, %s10, %s8
  $region1: #{tpu_custom_call.1} parent=0
    #allocation2 [shape = 'u8[8192]{0}', space=vmem, size = 0x2000, scoped, tag = 'input window, operand 1, single buffered']
    #allocation3 [shape = 's32[1]{0}', space=sflag, size = 0x4, scoped, tag = 'scoped memory for tpu_custom_call.1']
    #allocation4 [shape = 's32[1]{0}', space=sflag, size = 0x4, scoped, tag = 'scoped memory for tpu_custom_call.1']
    #allocation5 [shape = 'u8[4096]{0}', space=vmem, size = 0x1000, scoped, tag = 'output window, operand 0, single buffered']
    %12 = vsyncpa [#allocation3], 0
    %13 = vsyncpa [#allocation4], 0
    // Predicated region
    $region2: #{tpu_custom_call.1} parent=1 // pred_check
      _
    $region3: #{tpu_custom_call.1} parent=1 // pred_check_branch
      %15 = sbr.rel (0) target = $region5
    $region4: #{tpu_custom_call.1} parent=1 // pred_region
      _
    $region5: #{tpu_custom_call.1} parent=1 // pred_fallthru
      _
    // Predicated region
    $region6: #{tpu_custom_call.1} parent=1 // pred_check
      _
    $region7: #{tpu_custom_call.1} parent=1 // pred_check_branch
      %17 = sbr.rel (0) target = $region9
    $region8: #{tpu_custom_call.1} parent=1 // pred_region
      %s19 = ssub.s32 256, 256
      %20 = vsyncadd [#allocation3], %s19
      %s21 = sshll.u32 [#allocation2], 4
      %s22 = int_to_ptr.vmem [resolvable:$true] %s21
      %27 = dma.hbm_to_vmem [thread:$0]  %s1, 256, %s22, [#allocation3], 128, 128, 8
    $region9: #{tpu_custom_call.1} parent=1 // pred_fallthru
      _
    // Predicated region
    $region10: #{tpu_custom_call.1} parent=1 // pred_check
      _
    $region11: #{tpu_custom_call.1} parent=1 // pred_check_branch
      %29 = sbr.rel (0) target = $region13
    $region12: #{tpu_custom_call.1} parent=1 // pred_region
      _
    $region13: #{tpu_custom_call.1} parent=1 // pred_fallthru
      _
    // Predicated region
    $region14: #{tpu_custom_call.1} parent=1 // pred_check
      _
    $region15: #{tpu_custom_call.1} parent=1 // pred_check_branch
      %31 = sbr.rel (0) target = $region17
    $region16: #{tpu_custom_call.1} parent=1 // pred_region
      _
    $region17: #{tpu_custom_call.1} parent=1 // pred_fallthru
      _
    // Predicated region
    $region18: #{tpu_custom_call.1} parent=1 // pred_check
      _
    $region19: #{tpu_custom_call.1} parent=1 // pred_check_branch
      %33 = sbr.rel (0) target = $region21
    $region20: #{tpu_custom_call.1} parent=1 // pred_region
      _
    $region21: #{tpu_custom_call.1} parent=1 // pred_fallthru
      _
    // Predicated region
    $region22: #{tpu_custom_call.1} parent=1 // pred_check
      _
    $region23: #{tpu_custom_call.1} parent=1 // pred_check_branch
      %35 = sbr.rel (0) target = $region25
    $region24: #{tpu_custom_call.1} parent=1 // pred_region
      _
    $region25: #{tpu_custom_call.1} parent=1 // pred_fallthru
      _
    // Predicated region
    $region26: #{tpu_custom_call.1} parent=1 // pred_check
      _
    $region27: #{tpu_custom_call.1} parent=1 // pred_check_branch
      %37 = sbr.rel (0) target = $region29
    $region28: #{tpu_custom_call.1} parent=1 // pred_region
      _
    $region29: #{tpu_custom_call.1} parent=1 // pred_fallthru
      _
    // Predicated region
    $region30: #{tpu_custom_call.1} parent=1 // pred_check
      _
    $region31: #{tpu_custom_call.1} parent=1 // pred_check_branch
      %39 = sbr.rel (0) target = $region33
    $region32: #{tpu_custom_call.1} parent=1 // pred_region
      %40 = dma.done [#allocation3], 256
    $region33: #{tpu_custom_call.1} parent=1 // pred_fallthru
      _
    %v41 = vld [vmem:[%s0] sm:$0xff]
    %v42 = vld [vmem:[#allocation2] sm:$0xff]
    %v43 = vld [vmem:[#allocation2 + $0x8] sm:$0xff]
    %v44 = vld [vmem:[%s2] sm:$0x1]
    %v46 = vlaneseq
    %v47 = vshrl.u32 %v46, 7
    %v48 = vsub.s32 0, %v47
    %v49 = vrot.slane %v44, %v48
    %vm51 = vcmask 130048
    %v53 = vsel %vm51, %v41, 0
    %55 = vmatprep.subr.mxu0 0.0
    %56 = vmatpush1.msra.mxu0 0.0
    %57 = vmatprep.subr.mxu0 0.0
    %58 = vmatpush1.msra.mxu0 0.0
    %59 = vmatprep.subr.mxu0 0.0
    %60 = vmatpush1.msra.mxu0 0.0
    %61 = vmatprep.subr.mxu0 0.0
    %62 = vmatpush1.msra.mxu0 0.0
    %63 = vmatprep.subr.mxu0 0.0
    %64 = vmatpush1.msra.mxu0 0.0
    %65 = vmatprep.subr.mxu0 0.0
    %66 = vmatpush1.msra.mxu0 0.0
    %67 = vmatprep.subr.mxu0 0.0
    %68 = vmatpush1.msra.mxu0 0.0
    %69 = vmatprep.subr.mxu0 0.0
    %70 = vmatpush1.msra.mxu0 0.0
    %71 = vmatprep.subr.mxu0 0.0
    %72 = vmatpush1.msra.mxu0 0.0
    %73 = vmatprep.subr.mxu0 0.0
    %74 = vmatpush1.msra.mxu0 0.0
    %75 = vmatprep.subr.mxu0 0.0
    %76 = vmatpush1.msra.mxu0 0.0
    %77 = vmatprep.subr.mxu0 0.0
    %78 = vmatpush1.msra.mxu0 0.0
    %79 = vmatprep.subr.mxu0 0.0
    %80 = vmatpush1.msra.mxu0 0.0
    %81 = vmatprep.subr.mxu0 0.0
    %82 = vmatpush1.msra.mxu0 0.0
    %83 = vmatprep.subr.mxu0 0.0
    %84 = vmatpush1.msra.mxu0 %v43
    %85 = vmatprep.subr.mxu0 0.0
    %86 = vmatpush1.msra.mxu0 %v42
    %87 = vmatprep.subr.mxu0 0.0
    %88 = vmatpush2.msra.mxu0 0.0
    %89 = vmatprep.subr.mxu0 0.0
    %90 = vmatpush2.msra.mxu0 0.0
    %91 = vmatprep.subr.mxu0 0.0
    %92 = vmatpush2.msra.mxu0 0.0
    %93 = vmatprep.subr.mxu0 0.0
    %94 = vmatpush2.msra.mxu0 0.0
    %95 = vmatprep.subr.mxu0 0.0
    %96 = vmatpush2.msra.mxu0 0.0
    %97 = vmatprep.subr.mxu0 0.0
    %98 = vmatpush2.msra.mxu0 0.0
    %99 = vmatprep.subr.mxu0 0.0
    %100 = vmatpush2.msra.mxu0 0.0
    %101 = vmatprep.subr.mxu0 0.0
    %102 = vmatpush2.msra.mxu0 0.0
    %103 = vmatprep.subr.mxu0 0.0
    %104 = vmatpush2.msra.mxu0 0.0
    %105 = vmatprep.subr.mxu0 0.0
    %106 = vmatpush2.msra.mxu0 0.0
    %107 = vmatprep.subr.mxu0 0.0
    %108 = vmatpush2.msra.mxu0 0.0
    %109 = vmatprep.subr.mxu0 0.0
    %110 = vmatpush2.msra.mxu0 0.0
    %111 = vmatprep.subr.mxu0 0.0
    %112 = vmatpush2.msra.mxu0 0.0
    %113 = vmatprep.subr.mxu0 0.0
    %114 = vmatpush2.msra.mxu0 0.0
    %115 = vmatprep.subr.mxu0 0.0
    %116 = vmatpush2.msra.mxu0 0.0
    %117 = vmatprep.subr.mxu0 0.0
    %118 = vmatpush2.msra.mxu0 0.0
    %119 = vmatprep.mubr.f32.mxu0 0.0
    %120 = vmatmul.mubr.f32.gmra.mxu0 %v53
    %v121 = vpop.f32.mrf.mxu0
    %v122 = vadd.f32 %v49, %v121
    %v123 = vpop.f32.mrf.mxu0
    %124 = vdwg.mxu0
    %v125 = vtanh.pop %v122
    %v126 = vld [vmem:[%s3] sm:$0xff]
    %v127 = vld [vmem:[%s3 + $0x8] sm:$0xff]
    %v128 = vld [vmem:[%s3 + $0x10] sm:$0xff]
    %v129 = vld [vmem:[%s3 + $0x18] sm:$0xff]
    %v130 = vld [vmem:[%s4] sm:$0x1]
    %v132 = vlaneseq
    %v133 = vshrl.u32 %v132, 7
    %v134 = vsub.s32 0, %v133
    %v135 = vrot.slane %v130, %v134
    %vm137 = vcmask 261120
    %v139 = vsel %vm137, %v125, 0
    %141 = vmatprep.subr.mxu0 0.0
    %142 = vmatpush1.msra.mxu0 0.0
    %143 = vmatprep.subr.mxu0 0.0
    %144 = vmatpush1.msra.mxu0 0.0
    %145 = vmatprep.subr.mxu0 0.0
    %146 = vmatpush1.msra.mxu0 0.0
    %147 = vmatprep.subr.mxu0 0.0
    %148 = vmatpush1.msra.mxu0 0.0
    %149 = vmatprep.subr.mxu0 0.0
    %150 = vmatpush1.msra.mxu0 0.0
    %151 = vmatprep.subr.mxu0 0.0
    %152 = vmatpush1.msra.mxu0 0.0
    %153 = vmatprep.subr.mxu0 0.0
    %154 = vmatpush1.msra.mxu0 0.0
    %155 = vmatprep.subr.mxu0 0.0
    %156 = vmatpush1.msra.mxu0 0.0
    %157 = vmatprep.subr.mxu0 0.0
    %158 = vmatpush1.msra.mxu0 0.0
    %159 = vmatprep.subr.mxu0 0.0
    %160 = vmatpush1.msra.mxu0 0.0
    %161 = vmatprep.subr.mxu0 0.0
    %162 = vmatpush1.msra.mxu0 0.0
    %163 = vmatprep.subr.mxu0 0.0
    %164 = vmatpush1.msra.mxu0 0.0
    %165 = vmatprep.subr.mxu0 0.0
    %166 = vmatpush1.msra.mxu0 %v129
    %167 = vmatprep.subr.mxu0 0.0
    %168 = vmatpush1.msra.mxu0 %v128
    %169 = vmatprep.subr.mxu0 0.0
    %170 = vmatpush1.msra.mxu0 %v127
    %171 = vmatprep.subr.mxu0 0.0
    %172 = vmatpush1.msra.mxu0 %v126
    %173 = vmatprep.subr.mxu0 0.0
    %174 = vmatpush2.msra.mxu0 0.0
    %175 = vmatprep.subr.mxu0 0.0
    %176 = vmatpush2.msra.mxu0 0.0
    %177 = vmatprep.subr.mxu0 0.0
    %178 = vmatpush2.msra.mxu0 0.0
    %179 = vmatprep.subr.mxu0 0.0
    %180 = vmatpush2.msra.mxu0 0.0
    %181 = vmatprep.subr.mxu0 0.0
    %182 = vmatpush2.msra.mxu0 0.0
    %183 = vmatprep.subr.mxu0 0.0
    %184 = vmatpush2.msra.mxu0 0.0
    %185 = vmatprep.subr.mxu0 0.0
    %186 = vmatpush2.msra.mxu0 0.0
    %187 = vmatprep.subr.mxu0 0.0
    %188 = vmatpush2.msra.mxu0 0.0
    %189 = vmatprep.subr.mxu0 0.0
    %190 = vmatpush2.msra.mxu0 0.0
    %191 = vmatprep.subr.mxu0 0.0
    %192 = vmatpush2.msra.mxu0 0.0
    %193 = vmatprep.subr.mxu0 0.0
    %194 = vmatpush2.msra.mxu0 0.0
    %195 = vmatprep.subr.mxu0 0.0
    %196 = vmatpush2.msra.mxu0 0.0
    %197 = vmatprep.subr.mxu0 0.0
    %198 = vmatpush2.msra.mxu0 0.0
    %199 = vmatprep.subr.mxu0 0.0
    %200 = vmatpush2.msra.mxu0 0.0
    %201 = vmatprep.subr.mxu0 0.0
    %202 = vmatpush2.msra.mxu0 0.0
    %203 = vmatprep.subr.mxu0 0.0
    %204 = vmatpush2.msra.mxu0 0.0
    %205 = vmatprep.mubr.f32.mxu0 0.0
    %206 = vmatmul.mubr.f32.gmra.mxu0 %v139
    %v207 = vpop.f32.mrf.mxu0
    %v208 = vadd.f32 %v135, %v207
    %v209 = vpop.f32.mrf.mxu0
    %210 = vdwg.mxu0
    %v211 = vtanh.pop %v208
    %v212 = vld [vmem:[%s5] sm:$0xff]
    %v213 = vld [vmem:[%s5 + $0x8] sm:$0xff]
    %v214 = vld [vmem:[%s5 + $0x10] sm:$0xff]
    %v215 = vld [vmem:[%s5 + $0x18] sm:$0xff]
    %v216 = vld [vmem:[%s6] sm:$0x1]
    %v218 = vlaneseq
    %v219 = vshrl.u32 %v218, 7
    %v220 = vsub.s32 0, %v219
    %v221 = vrot.slane %v216, %v220
    %v224 = vsel %vm137, %v211, 0
    %226 = vmatprep.subr.mxu0 0.0
    %227 = vmatpush1.msra.mxu0 0.0
    %228 = vmatprep.subr.mxu0 0.0
    %229 = vmatpush1.msra.mxu0 0.0
    %230 = vmatprep.subr.mxu0 0.0
    %231 = vmatpush1.msra.mxu0 0.0
    %232 = vmatprep.subr.mxu0 0.0
    %233 = vmatpush1.msra.mxu0 0.0
    %234 = vmatprep.subr.mxu0 0.0
    %235 = vmatpush1.msra.mxu0 0.0
    %236 = vmatprep.subr.mxu0 0.0
    %237 = vmatpush1.msra.mxu0 0.0
    %238 = vmatprep.subr.mxu0 0.0
    %239 = vmatpush1.msra.mxu0 0.0
    %240 = vmatprep.subr.mxu0 0.0
    %241 = vmatpush1.msra.mxu0 0.0
    %242 = vmatprep.subr.mxu0 0.0
    %243 = vmatpush1.msra.mxu0 0.0
    %244 = vmatprep.subr.mxu0 0.0
    %245 = vmatpush1.msra.mxu0 0.0
    %246 = vmatprep.subr.mxu0 0.0
    %247 = vmatpush1.msra.mxu0 0.0
    %248 = vmatprep.subr.mxu0 0.0
    %249 = vmatpush1.msra.mxu0 0.0
    %250 = vmatprep.subr.mxu0 0.0
    %251 = vmatpush1.msra.mxu0 %v215
    %252 = vmatprep.subr.mxu0 0.0
    %253 = vmatpush1.msra.mxu0 %v214
    %254 = vmatprep.subr.mxu0 0.0
    %255 = vmatpush1.msra.mxu0 %v213
    %256 = vmatprep.subr.mxu0 0.0
    %257 = vmatpush1.msra.mxu0 %v212
    %258 = vmatprep.subr.mxu0 0.0
    %259 = vmatpush2.msra.mxu0 0.0
    %260 = vmatprep.subr.mxu0 0.0
    %261 = vmatpush2.msra.mxu0 0.0
    %262 = vmatprep.subr.mxu0 0.0
    %263 = vmatpush2.msra.mxu0 0.0
    %264 = vmatprep.subr.mxu0 0.0
    %265 = vmatpush2.msra.mxu0 0.0
    %266 = vmatprep.subr.mxu0 0.0
    %267 = vmatpush2.msra.mxu0 0.0
    %268 = vmatprep.subr.mxu0 0.0
    %269 = vmatpush2.msra.mxu0 0.0
    %270 = vmatprep.subr.mxu0 0.0
    %271 = vmatpush2.msra.mxu0 0.0
    %272 = vmatprep.subr.mxu0 0.0
    %273 = vmatpush2.msra.mxu0 0.0
    %274 = vmatprep.subr.mxu0 0.0
    %275 = vmatpush2.msra.mxu0 0.0
    %276 = vmatprep.subr.mxu0 0.0
    %277 = vmatpush2.msra.mxu0 0.0
    %278 = vmatprep.subr.mxu0 0.0
    %279 = vmatpush2.msra.mxu0 0.0
    %280 = vmatprep.subr.mxu0 0.0
    %281 = vmatpush2.msra.mxu0 0.0
    %282 = vmatprep.subr.mxu0 0.0
    %283 = vmatpush2.msra.mxu0 0.0
    %284 = vmatprep.subr.mxu0 0.0
    %285 = vmatpush2.msra.mxu0 0.0
    %286 = vmatprep.subr.mxu0 0.0
    %287 = vmatpush2.msra.mxu0 0.0
    %288 = vmatprep.subr.mxu0 0.0
    %289 = vmatpush2.msra.mxu0 0.0
    %290 = vmatprep.mubr.f32.mxu0 0.0
    %291 = vmatmul.mubr.f32.gmra.mxu0 %v224
    %v292 = vpop.f32.mrf.mxu0
    %v293 = vadd.f32 %v221, %v292
    %v294 = vpop.f32.mrf.mxu0
    %295 = vdwg.mxu0
    %vm296 = vcmask 48128
    %v297 = vsel %vm296, %v293, -inf
    %298 = vmax.xlane.f32.xlu0 %v297
    %v299 = vpop.xlane.xlu0 %298
    %v300 = vsub.f32 %v293, %v299
    %v301 = vmul.f32 %v300, 1.442695
    %v302 = vpow.pop %v301
    %v303 = vsel %vm296, %v302, 0.0
    %304 = vadd.xlane.f32.xlu0 %v303
    %v305 = vpop.xlane.xlu0 %304
    %v306 = vrcp.pop %v305
    %v307 = vmul.f32 %v302, %v306
    %308 = vst.msk [vmem:[#allocation5] sm:$0xff] %vm296, %v307
    // Predicated region
    $region34: #{tpu_custom_call.1} parent=1 // pred_check
      _
    $region35: #{tpu_custom_call.1} parent=1 // pred_check_branch
      %310 = sbr.rel (0) target = $region37
    $region36: #{tpu_custom_call.1} parent=1 // pred_region
      %s312 = ssub.s32 128, 64
      %313 = vsyncadd [#allocation4], %s312
      %s314 = sshll.u32 [#allocation5], 4
      %s315 = int_to_ptr.vmem [resolvable:$true] %s314
      %320 = dma.vmem_to_hbm [thread:$0]  %s315, 64, %s7, [#allocation4], 64, 64, 4
    $region37: #{tpu_custom_call.1} parent=1 // pred_fallthru
      _
    // Predicated region
    $region38: #{tpu_custom_call.1} parent=1 // pred_check
      _
    $region39: #{tpu_custom_call.1} parent=1 // pred_check_branch
      %322 = sbr.rel (0) target = $region41
    $region40: #{tpu_custom_call.1} parent=1 // pred_region
      %323 = dma.done [#allocation4], 128
    $region41: #{tpu_custom_call.1} parent=1 // pred_fallthru
      _
    %324 = vsyncpa [#allocation3], 1
    %325 = vsyncpa [#allocation4], 1

</llo_original>
